<compile_context>
chip_gen: v5e
topology: v5e:2x2
jax: 0.10.0
libtpu: 0.0.40
codegen_flags: <defaults>
</compile_context>

<pallas_src>
import functools
import math

import jax
import jax.numpy as jnp
from jax.experimental import pallas as pl
from jax.experimental.pallas import tpu as pltpu


def _feat_embedding_kernel(x_ref, gamma_ref, beta_ref, w_ref, b_ref, o_ref, *,
                           eps, d_feat):
    # --- LayerNorm (PyTorch-custom variant: unbiased std, eps added to std) ---
    x = x_ref[...].astype(jnp.float32)                      # (TM, d_feat)
    mean = jnp.mean(x, axis=-1, keepdims=True)
    xc = x - mean
    var = jnp.sum(xc * xc, axis=-1, keepdims=True) * (1.0 / (d_feat - 1))
    std = jnp.sqrt(var)
    xn = gamma_ref[...] * xc / (std + eps) + beta_ref[...]  # (TM, d_feat)

    # --- Dropout: identity in eval/inference mode ---
    # TODO(synk): training-mode dropout would mask xn using pltpu.prng_random_bits.

    # --- Linear: xn @ W^T + b, done on the MXU with f32 accumulation ---
    out = jnp.dot(
        xn, w_ref[...],
        preferred_element_type=jnp.float32,
        precision=jax.lax.Precision.HIGHEST,
    ) + b_ref[...]
    o_ref[...] = out.astype(o_ref.dtype)


def _pick_tile(n, preferred, align):
    """Largest tile <= preferred that divides n and is a multiple of `align`
    (falls back to the full extent n)."""
    t = min(preferred, n)
    while t >= align:
        if n % t == 0 and t % align == 0:
            return t
        t -= align
    return n


def feat_embedding(x, gamma, beta, w, b, *, eps=1e-6):
    """FeatEmbedding.forward: Linear(Dropout(LayerNorm(x))), eval-mode dropout.

    x     : (B, T, d_feat) float32
    gamma : (d_feat,)  LayerNorm a_2
    beta  : (d_feat,)  LayerNorm b_2
    w     : (d_model, d_feat)  nn.Linear weight
    b     : (d_model,)         nn.Linear bias
    returns (B, T, d_model)
    """
    B, T, d_feat = x.shape
    d_model = w.shape[0]
    N = B * T
    assert N % 8 == 0, "B*T must be a multiple of 8 for f32 sublane tiling"
    assert d_feat % 128 == 0, "d_feat must be lane-aligned (multiple of 128)"
    assert d_model % 128 == 0, "d_model must be lane-aligned (multiple of 128)"

    x2 = x.reshape(N, d_feat)
    w_t = jnp.transpose(w)            # (d_feat, d_model): output cols on lanes
    gamma2 = gamma.reshape(1, d_feat)
    beta2 = beta.reshape(1, d_feat)
    b2 = b.reshape(1, d_model)

    tm = _pick_tile(N, 256, 8)          # row tile (sublane-dense)
    tn = _pick_tile(d_model, 512, 128)  # output-column tile (lane-dense)
    grid = (N // tm, d_model // tn)

    kernel = functools.partial(_feat_embedding_kernel, eps=eps, d_feat=d_feat)

    out = pl.pallas_call(
        kernel,
        out_shape=jax.ShapeDtypeStruct((N, d_model), x.dtype),
        grid_spec=pltpu.PrefetchScalarGridSpec(
            num_scalar_prefetch=0,
            grid=grid,
            in_specs=[
                pl.BlockSpec((tm, d_feat), lambda i, j: (i, 0)),   # x row tile
                pl.BlockSpec((1, d_feat), lambda i, j: (0, 0)),    # gamma
                pl.BlockSpec((1, d_feat), lambda i, j: (0, 0)),    # beta
                pl.BlockSpec((d_feat, tn), lambda i, j: (0, j)),   # W^T col tile
                pl.BlockSpec((1, tn), lambda i, j: (0, j)),        # bias col tile
            ],
            out_specs=pl.BlockSpec((tm, tn), lambda i, j: (i, j)),
        ),
        compiler_params=pltpu.CompilerParams(
            dimension_semantics=("parallel", "parallel"),
        ),
    )(x2, gamma2, beta2, w_t, b2)

    return out.reshape(B, T, d_model)


def _feat_embedding_ref(x, gamma, beta, w, b, eps=1e-6):
    """Pure-JAX reference matching the PyTorch module."""
    mean = jnp.mean(x, axis=-1, keepdims=True)
    std = jnp.std(x, axis=-1, ddof=1, keepdims=True)   # unbiased, like torch.std
    xn = gamma * (x - mean) / (std + eps) + beta
    return jnp.dot(xn, w.T, precision=jax.lax.Precision.HIGHEST) + b


if __name__ == "__main__":
    # Small deterministic setup consistent with FeatEmbedding(d_feat, d_model, p).
    batch, seq = 2, 8
    d_feat, d_model = 128, 256

    key = jax.random.PRNGKey(0)
    kx, kg, kbeta, kw, kb = jax.random.split(key, 5)

    x = jax.random.normal(kx, (batch, seq, d_feat), dtype=jnp.float32)
    gamma = 1.0 + 0.1 * jax.random.normal(kg, (d_feat,), dtype=jnp.float32)
    beta = 0.1 * jax.random.normal(kbeta, (d_feat,), dtype=jnp.float32)
    w = jax.random.normal(kw, (d_model, d_feat), dtype=jnp.float32) / math.sqrt(d_feat)
    b = 0.1 * jax.random.normal(kb, (d_model,), dtype=jnp.float32)

    out = feat_embedding(x, gamma, beta, w, b, eps=1e-6)
    out = jax.block_until_ready(out)

    ref = _feat_embedding_ref(x, gamma, beta, w, b, eps=1e-6)
    assert out.shape == (batch, seq, d_model)
    assert jnp.allclose(out, ref, atol=2e-4, rtol=2e-4), (
        float(jnp.max(jnp.abs(out - ref)))
    )

    print("KERNEL_OK")
</pallas_src>

<mosaic_0001>
module attributes {stable_mosaic.version = 11 : i64} {
  func.func @_feat_embedding_kernel(%arg0: i32, %arg1: i32, %arg2: memref<16x128xf32, #tpu.memory_space<vmem>>, %arg3: memref<1x128xf32, #tpu.memory_space<vmem>>, %arg4: memref<1x128xf32, #tpu.memory_space<vmem>>, %arg5: memref<128x256xf32, #tpu.memory_space<vmem>>, %arg6: memref<1x256xf32, #tpu.memory_space<vmem>>, %arg7: memref<16x256xf32, #tpu.memory_space<vmem>>) attributes {dimension_semantics = [#tpu.dimension_semantics<parallel>, #tpu.dimension_semantics<parallel>], iteration_bounds = array<i64: 1, 1>, scalar_prefetch = 0 : i64, scratch_operands = 0 : i64, tpu.core_type = #tpu.core_type<tc>, window_params = [{transform_indices = @transform_0, window_bounds = array<i64: 16, 128>}, {pipeline_mode = #tpu.pipeline_mode<synchronous>, transform_indices = @transform_1, window_bounds = array<i64: 1, 128>}, {pipeline_mode = #tpu.pipeline_mode<synchronous>, transform_indices = @transform_2, window_bounds = array<i64: 1, 128>}, {transform_indices = @transform_3, window_bounds = array<i64: 128, 256>}, {transform_indices = @transform_4, window_bounds = array<i64: 1, 256>}, {transform_indices = @transform_5, window_bounds = array<i64: 16, 256>}]} {
    %c0 = arith.constant 0 : index
    %c0_0 = arith.constant 0 : index
    %0 = vector.load %arg2[%c0, %c0_0] : memref<16x128xf32, #tpu.memory_space<vmem>>, vector<16x128xf32>
    %cst = arith.constant dense<0.000000e+00> : vector<16xf32>
    %1 = vector.multi_reduction <add>, %0, %cst [1] : vector<16x128xf32> to vector<16xf32>
    %2 = vector.shape_cast %1 : vector<16xf32> to vector<16x1xf32>
    %cst_1 = arith.constant 1.280000e+02 : f32
    %3 = vector.broadcast %cst_1 : f32 to vector<16x1xf32>
    %4 = arith.divf %2, %3 : vector<16x1xf32>
    %5 = vector.broadcast %4 : vector<16x1xf32> to vector<16x128xf32>
    %6 = arith.subf %0, %5 : vector<16x128xf32>
    %7 = arith.mulf %6, %6 : vector<16x128xf32>
    %cst_2 = arith.constant dense<0.000000e+00> : vector<16xf32>
    %8 = vector.multi_reduction <add>, %7, %cst_2 [1] : vector<16x128xf32> to vector<16xf32>
    %9 = vector.shape_cast %8 : vector<16xf32> to vector<16x1xf32>
    %cst_3 = arith.constant 0.00787401571 : f32
    %10 = vector.broadcast %cst_3 : f32 to vector<16x1xf32>
    %11 = arith.mulf %9, %10 : vector<16x1xf32>
    %12 = math.sqrt %11 : vector<16x1xf32>
    %c0_4 = arith.constant 0 : index
    %c0_5 = arith.constant 0 : index
    %13 = vector.load %arg3[%c0_4, %c0_5] : memref<1x128xf32, #tpu.memory_space<vmem>>, vector<1x128xf32>
    %14 = vector.broadcast %13 : vector<1x128xf32> to vector<16x128xf32>
    %15 = arith.mulf %14, %6 : vector<16x128xf32>
    %cst_6 = arith.constant 9.99999997E-7 : f32
    %16 = vector.broadcast %cst_6 : f32 to vector<16x1xf32>
    %17 = arith.addf %12, %16 : vector<16x1xf32>
    %18 = vector.broadcast %17 : vector<16x1xf32> to vector<16x128xf32>
    %19 = arith.divf %15, %18 : vector<16x128xf32>
    %c0_7 = arith.constant 0 : index
    %c0_8 = arith.constant 0 : index
    %20 = vector.load %arg4[%c0_7, %c0_8] : memref<1x128xf32, #tpu.memory_space<vmem>>, vector<1x128xf32>
    %21 = vector.broadcast %20 : vector<1x128xf32> to vector<16x128xf32>
    %22 = arith.addf %19, %21 : vector<16x128xf32>
    %c0_9 = arith.constant 0 : index
    %c0_10 = arith.constant 0 : index
    %23 = vector.load %arg5[%c0_9, %c0_10] : memref<128x256xf32, #tpu.memory_space<vmem>>, vector<128x256xf32>
    %cst_11 = arith.constant dense<0.000000e+00> : vector<16x256xf32>
    %24 = tpu.matmul %22, %23, %cst_11 {dimension_numbers = #tpu.dot_dimension_numbers<[1], [0], [0], [1], [0, 0, 1, 1], [], []>, precision = #tpu.contract_precision<fp32>} : vector<16x128xf32>, vector<128x256xf32>, vector<16x256xf32> -> vector<16x256xf32>
    %c0_12 = arith.constant 0 : index
    %c0_13 = arith.constant 0 : index
    %25 = vector.load %arg6[%c0_12, %c0_13] : memref<1x256xf32, #tpu.memory_space<vmem>>, vector<1x256xf32>
    %26 = vector.broadcast %25 : vector<1x256xf32> to vector<16x256xf32>
    %27 = arith.addf %24, %26 : vector<16x256xf32>
    %c0_14 = arith.constant 0 : index
    %c0_15 = arith.constant 0 : index
    %28 = vector.load %arg7[%c0_14, %c0_15] : memref<16x256xf32, #tpu.memory_space<vmem>>, vector<16x256xf32>
    tpu.vector_store %arg7[%c0_14, %c0_15], %27 {strides = array<i32>} : memref<16x256xf32, #tpu.memory_space<vmem>>, vector<16x256xf32>,
    return
  }
  func.func @transform_0(%arg0: i32, %arg1: i32) -> (i32, i32) {
    %c0_i32 = arith.constant 0 : i32
    %c0_i32_0 = arith.constant 0 : i32
    return %arg0, %c0_i32 : i32, i32
  }
  func.func @transform_1(%arg0: i32, %arg1: i32) -> (i32, i32) {
    %c0_i32 = arith.constant 0 : i32
    %c0_i32_0 = arith.constant 0 : i32
    %c0_i32_1 = arith.constant 0 : i32
    return %c0_i32, %c0_i32_0 : i32, i32
  }
  func.func @transform_2(%arg0: i32, %arg1: i32) -> (i32, i32) {
    %c0_i32 = arith.constant 0 : i32
    %c0_i32_0 = arith.constant 0 : i32
    %c0_i32_1 = arith.constant 0 : i32
    return %c0_i32, %c0_i32_0 : i32, i32
  }
  func.func @transform_3(%arg0: i32, %arg1: i32) -> (i32, i32) {
    %c0_i32 = arith.constant 0 : i32
    %c0_i32_0 = arith.constant 0 : i32
    return %c0_i32, %arg1 : i32, i32
  }
  func.func @transform_4(%arg0: i32, %arg1: i32) -> (i32, i32) {
    %c0_i32 = arith.constant 0 : i32
    %c0_i32_0 = arith.constant 0 : i32
    return %c0_i32, %arg1 : i32, i32
  }
  func.func @transform_5(%arg0: i32, %arg1: i32) -> (i32, i32) {
    %c0_i32 = arith.constant 0 : i32
    return %arg0, %arg1 : i32, i32
  }
}

</mosaic_0001>

<llo_original>
// kernel: tpu_custom_call.1
$region0: #{tpu_custom_call.1}
  #allocation0 [shape = 'u32[]', space=smem, size = 0x4, offset = 0x4, fixed_abs, tag = 'smem constant byte address 0x4 - core index']
  #allocation1 [shape = 'u32[72,128]{1,0:T(1,128)}', space=vmem, size = 0x9000, scoped, tag = 'internal scratch']
  %s0 = inlined_call_operand.hbm [shape: f32[16,128], index: 0, kind: input, shape index: {}]
  %s1 = inlined_call_operand.hbm [shape: f32[1,128], index: 1, kind: input, shape index: {}]
  %s2 = inlined_call_operand.vmem [shape: f32[1,128], index: 2, kind: input, shape index: {}]
  %s3 = inlined_call_operand.hbm [shape: f32[128,256], index: 3, kind: input, shape index: {}]
  %s4 = inlined_call_operand.vmem [shape: f32[1,256], index: 4, kind: input, shape index: {}]
  %s5 = inlined_call_operand.hbm [shape: f32[16,256], index: 5, kind: output, shape index: {}]
  %s6 = sld [smem:[#allocation0]]
  $region42: #{tpu_custom_call.1} parent=0
    _
  %s8 = ssub.s32 1, %s6
  %s9 = scalar_select 0, %s8, %s6
  $region1: #{tpu_custom_call.1} parent=0
    #allocation2 [shape = 'u8[8192]{0}', space=vmem, size = 0x2000, scoped, tag = 'input window, operand 0, single buffered']
    #allocation3 [shape = 's32[1]{0}', space=sflag, size = 0x4, scoped, tag = 'scoped memory for tpu_custom_call.1']
    #allocation4 [shape = 's32[1]{0}', space=sflag, size = 0x4, scoped, tag = 'scoped memory for tpu_custom_call.1']
    #allocation5 [shape = 'u8[512]{0}', space=vmem, size = 0x400, scoped, tag = 'input window, operand 1, single buffered']
    #allocation6 [shape = 's32[1]{0}', space=sflag, size = 0x4, scoped, tag = 'scoped memory for tpu_custom_call.1']
    #allocation7 [shape = 'u8[131072]{0}', space=vmem, size = 0x20000, scoped, tag = 'input window, operand 3, single buffered']
    #allocation8 [shape = 'u8[16384]{0}', space=vmem, size = 0x4000, scoped, tag = 'output window, operand 0, single buffered']
    %10 = vsyncpa [#allocation3], 0
    %11 = vsyncpa [#allocation6], 0
    %12 = vsyncpa [#allocation4], 0
    // Predicated region
    $region2: #{tpu_custom_call.1} parent=1 // pred_check
      _
    $region3: #{tpu_custom_call.1} parent=1 // pred_check_branch
      %14 = sbr.rel (0) target = $region5
    $region4: #{tpu_custom_call.1} parent=1 // pred_region
      %16 = vsyncadd [#allocation3], 0
      %s17 = sshll.u32 %s0, 4
      %s18 = int_to_ptr.hbm [resolvable:$true] %s17
      %s19 = sshll.u32 [#allocation2], 4
      %s20 = int_to_ptr.vmem [resolvable:$true] %s19
      %25 = dma.hbm_to_vmem [thread:$0]  %s18, 256, %s20, [#allocation3], 128, 128, 8
    $region5: #{tpu_custom_call.1} parent=1 // pred_fallthru
      _
    // Predicated region
    $region6: #{tpu_custom_call.1} parent=1 // pred_check
      _
    $region7: #{tpu_custom_call.1} parent=1 // pred_check_branch
      %27 = sbr.rel (0) target = $region9
    $region8: #{tpu_custom_call.1} parent=1 // pred_region
      %29 = vsyncadd [#allocation6], 0
      %s31 = sshll.u32 %s1, 4
      %s32 = int_to_ptr.hbm [resolvable:$true] %s31
      %s33 = sshll.u32 [#allocation5], 4
      %s34 = int_to_ptr.vmem [resolvable:$true] %s33
      %36 = dma.hbm_to_vmem [thread:$0]  %s32, 16, %s34, [#allocation6]
    $region9: #{tpu_custom_call.1} parent=1 // pred_fallthru
      _
    // Predicated region
    $region10: #{tpu_custom_call.1} parent=1 // pred_check
      _
    $region11: #{tpu_custom_call.1} parent=1 // pred_check_branch
      %38 = sbr.rel (0) target = $region13
    $region12: #{tpu_custom_call.1} parent=1 // pred_region
      _
    $region13: #{tpu_custom_call.1} parent=1 // pred_fallthru
      _
    // Predicated region
    $region14: #{tpu_custom_call.1} parent=1 // pred_check
      _
    $region15: #{tpu_custom_call.1} parent=1 // pred_check_branch
      %40 = sbr.rel (0) target = $region17
    $region16: #{tpu_custom_call.1} parent=1 // pred_region
      %42 = vsyncadd [#allocation6], 0
      %s43 = sshll.u32 %s3, 4
      %s44 = int_to_ptr.hbm [resolvable:$true] %s43
      %s45 = sshll.u32 [#allocation7], 4
      %s46 = int_to_ptr.vmem [resolvable:$true] %s45
      %51 = dma.hbm_to_vmem [thread:$0]  %s44, 4096, %s46, [#allocation6], 256, 256, 16
    $region17: #{tpu_custom_call.1} parent=1 // pred_fallthru
      _
    // Predicated region
    $region18: #{tpu_custom_call.1} parent=1 // pred_check
      _
    $region19: #{tpu_custom_call.1} parent=1 // pred_check_branch
      %53 = sbr.rel (0) target = $region21
    $region20: #{tpu_custom_call.1} parent=1 // pred_region
      _
    $region21: #{tpu_custom_call.1} parent=1 // pred_fallthru
      _
    // Predicated region
    $region22: #{tpu_custom_call.1} parent=1 // pred_check
      _
    $region23: #{tpu_custom_call.1} parent=1 // pred_check_branch
      %55 = sbr.rel (0) target = $region25
    $region24: #{tpu_custom_call.1} parent=1 // pred_region
      %57 = dma.done [#allocation3], 256
    $region25: #{tpu_custom_call.1} parent=1 // pred_fallthru
      _
    // Predicated region
    $region26: #{tpu_custom_call.1} parent=1 // pred_check
      _
    $region27: #{tpu_custom_call.1} parent=1 // pred_check_branch
      %59 = sbr.rel (0) target = $region29
    $region28: #{tpu_custom_call.1} parent=1 // pred_region
      %61 = dma.done [#allocation6], 16
    $region29: #{tpu_custom_call.1} parent=1 // pred_fallthru
      _
    // Predicated region
    $region30: #{tpu_custom_call.1} parent=1 // pred_check
      _
    $region31: #{tpu_custom_call.1} parent=1 // pred_check_branch
      %63 = sbr.rel (0) target = $region33
    $region32: #{tpu_custom_call.1} parent=1 // pred_region
      %65 = dma.done [#allocation6], 4096
    $region33: #{tpu_custom_call.1} parent=1 // pred_fallthru
      _
    %v66 = vld [vmem:[#allocation2] sm:$0xff]
    %v67 = vld [vmem:[#allocation2 + $0x8] sm:$0xff]
    %68 = vadd.xlane.f32.xlu0 %v66
    %v69 = vpop.xlane.xlu0 %68
    %70 = vadd.xlane.f32.xlu0 %v67
    %v71 = vpop.xlane.xlu0 %70
    %v72 = vrcp.pop 128.0
    %v73 = vmul.f32 128.0, %v72
    %v74 = vsub.f32 1.0, %v73
    %v75 = vmul.f32 %v72, %v74
    %v76 = vadd.f32 %v72, %v75
    %vm77 = vweird.f32 %v72
    %v78 = vsel %vm77, %v72, %v76
    %v79 = vmul.f32 %v69, %v78
    %v80 = vmul.f32 %v71, %v78
    %v81 = vsub.f32 %v66, %v79
    %v82 = vsub.f32 %v67, %v80
    %v83 = vmul.f32 %v81, %v81
    %v84 = vmul.f32 %v82, %v82
    %85 = vadd.xlane.f32.xlu0 %v83
    %v86 = vpop.xlane.xlu0 %85
    %87 = vadd.xlane.f32.xlu0 %v84
    %v88 = vpop.xlane.xlu0 %87
    %v89 = vmul.f32 %v86, 0.007874016
    %v90 = vmul.f32 %v88, 0.007874016
    %v91 = vrsqrt.pop %v89
    %v92 = vmul.f32 %v91, %v89
    %v93 = vmul.f32 %v92, %v91
    %v94 = vmul.f32 0.5, %v93
    %v95 = vsub.f32 1.5, %v94
    %v96 = vmul.f32 %v91, %v95
    %v97 = vmul.f32 %v89, %v96
    %vm98 = vcmp.eq.f32.partialorder %v89, inf
    %v99 = vsel %vm98, %v89, %v97
    %vm100 = vcmp.eq.f32.partialorder %v89, 0.0
    %v101 = vand.u32 %v89, 2147483648
    %v102 = vsel %vm100, %v101, %v99
    %v103 = vrsqrt.pop %v90
    %v104 = vmul.f32 %v103, %v90
    %v105 = vmul.f32 %v104, %v103
    %v106 = vmul.f32 0.5, %v105
    %v107 = vsub.f32 1.5, %v106
    %v108 = vmul.f32 %v103, %v107
    %v109 = vmul.f32 %v90, %v108
    %vm110 = vcmp.eq.f32.partialorder %v90, inf
    %v111 = vsel %vm110, %v90, %v109
    %vm112 = vcmp.eq.f32.partialorder %v90, 0.0
    %v113 = vand.u32 %v90, 2147483648
    %v114 = vsel %vm112, %v113, %v111
    %v115 = vld [vmem:[#allocation5] sm:$0x1]
    %v117 = vperm.slane %v115, 0
    %v119 = vmul.f32 %v117, %v81
    %v120 = vmul.f32 %v117, %v82
    %v121 = vadd.f32 %v102, 1e-06
    %v122 = vadd.f32 %v114, 1e-06
    %v123 = vrcp.pop %v121
    %v124 = vmul.f32 %v121, %v123
    %v125 = vsub.f32 1.0, %v124
    %v126 = vmul.f32 %v123, %v125
    %v127 = vadd.f32 %v123, %v126
    %vm128 = vweird.f32 %v121
    %vm129 = vweird.f32 %v123
    %vm130 = vmor %vm128, %vm129
    %v131 = vsel %vm130, %v123, %v127
    %v132 = vand.u32 2147483647, %v121
    %vm133 = vcmp.eq.f32.partialorder %v132, 8.507059e+37
    %v134 = vand.u32 %v121, 2147483648
    %v135 = vor.u32 1.1754944e-38, %v134
    %v136 = vsel %vm133, %v135, %v131
    %v137 = vmul.f32 %v119, %v136
    %v138 = vrcp.pop %v122
    %v139 = vmul.f32 %v122, %v138
    %v140 = vsub.f32 1.0, %v139
    %v141 = vmul.f32 %v138, %v140
    %v142 = vadd.f32 %v138, %v141
    %vm143 = vweird.f32 %v122
    %vm144 = vweird.f32 %v138
    %vm145 = vmor %vm143, %vm144
    %v146 = vsel %vm145, %v138, %v142
    %v147 = vand.u32 2147483647, %v122
    %vm148 = vcmp.eq.f32.partialorder %v147, 8.507059e+37
    %v149 = vand.u32 %v122, 2147483648
    %v150 = vor.u32 1.1754944e-38, %v149
    %v151 = vsel %vm148, %v150, %v146
    %v152 = vmul.f32 %v120, %v151
    %v153 = vld [vmem:[%s2] sm:$0x1]
    %v155 = vperm.slane %v153, 0
    %v157 = vadd.f32 %v137, %v155
    %v158 = vadd.f32 %v152, %v155
    %v159 = vld [vmem:[#allocation7] sm:$0xff]
    %v160 = vld [vmem:[#allocation7 + $0x8] sm:$0xff]
    %v161 = vld [vmem:[#allocation7 + $0x10] sm:$0xff]
    %v162 = vld [vmem:[#allocation7 + $0x18] sm:$0xff]
    %v163 = vld [vmem:[#allocation7 + $0x20] sm:$0xff]
    %v164 = vld [vmem:[#allocation7 + $0x28] sm:$0xff]
    %v165 = vld [vmem:[#allocation7 + $0x30] sm:$0xff]
    %v166 = vld [vmem:[#allocation7 + $0x38] sm:$0xff]
    %v167 = vld [vmem:[#allocation7 + $0x40] sm:$0xff]
    %v168 = vld [vmem:[#allocation7 + $0x48] sm:$0xff]
    %v169 = vld [vmem:[#allocation7 + $0x50] sm:$0xff]
    %v170 = vld [vmem:[#allocation7 + $0x58] sm:$0xff]
    %v171 = vld [vmem:[#allocation7 + $0x60] sm:$0xff]
    %v172 = vld [vmem:[#allocation7 + $0x68] sm:$0xff]
    %v173 = vld [vmem:[#allocation7 + $0x70] sm:$0xff]
    %v174 = vld [vmem:[#allocation7 + $0x78] sm:$0xff]
    %v175 = vld [vmem:[#allocation7 + $0x80] sm:$0xff]
    %v176 = vld [vmem:[#allocation7 + $0x88] sm:$0xff]
    %v177 = vld [vmem:[#allocation7 + $0x90] sm:$0xff]
    %v178 = vld [vmem:[#allocation7 + $0x98] sm:$0xff]
    %v179 = vld [vmem:[#allocation7 + $0xa0] sm:$0xff]
    %v180 = vld [vmem:[#allocation7 + $0xa8] sm:$0xff]
    %v181 = vld [vmem:[#allocation7 + $0xb0] sm:$0xff]
    %v182 = vld [vmem:[#allocation7 + $0xb8] sm:$0xff]
    %v183 = vld [vmem:[#allocation7 + $0xc0] sm:$0xff]
    %v184 = vld [vmem:[#allocation7 + $0xc8] sm:$0xff]
    %v185 = vld [vmem:[#allocation7 + $0xd0] sm:$0xff]
    %v186 = vld [vmem:[#allocation7 + $0xd8] sm:$0xff]
    %v187 = vld [vmem:[#allocation7 + $0xe0] sm:$0xff]
    %v188 = vld [vmem:[#allocation7 + $0xe8] sm:$0xff]
    %v189 = vld [vmem:[#allocation7 + $0xf0] sm:$0xff]
    %v190 = vld [vmem:[#allocation7 + $0xf8] sm:$0xff]
    %v191 = vld [vmem:[%s4] sm:$0x3]
    %v193 = vperm.slane %v191, 0
    %v194 = vperm.slane %v191, 1
    %v197 = vand.u32 %v189, 4294901760
    %198 = vmatpush.msra.mxu0 %v197
    %v199 = vand.u32 %v187, 4294901760
    %200 = vmatpush.msra.mxu0 %v199
    %v201 = vand.u32 %v185, 4294901760
    %202 = vmatpush.msra.mxu0 %v201
    %v203 = vand.u32 %v183, 4294901760
    %204 = vmatpush.msra.mxu0 %v203
    %v205 = vand.u32 %v181, 4294901760
    %206 = vmatpush.msra.mxu0 %v205
    %v207 = vand.u32 %v179, 4294901760
    %208 = vmatpush.msra.mxu0 %v207
    %v209 = vand.u32 %v177, 4294901760
    %210 = vmatpush.msra.mxu0 %v209
    %v211 = vand.u32 %v175, 4294901760
    %212 = vmatpush.msra.mxu0 %v211
    %v213 = vand.u32 %v173, 4294901760
    %214 = vmatpush.msra.mxu0 %v213
    %v215 = vand.u32 %v171, 4294901760
    %216 = vmatpush.msra.mxu0 %v215
    %v217 = vand.u32 %v169, 4294901760
    %218 = vmatpush.msra.mxu0 %v217
    %v219 = vand.u32 %v167, 4294901760
    %220 = vmatpush.msra.mxu0 %v219
    %v221 = vand.u32 %v165, 4294901760
    %222 = vmatpush.msra.mxu0 %v221
    %v223 = vand.u32 %v163, 4294901760
    %224 = vmatpush.msra.mxu0 %v223
    %v225 = vand.u32 %v161, 4294901760
    %226 = vmatpush.msra.mxu0 %v225
    %v227 = vand.u32 %v159, 4294901760
    %228 = vmatpush.msra.mxu0 %v227
    %v229 = vand.u32 %v157, 4294901760
    %v230 = vsub.f32 %v157, %v229
    %v231 = vand.u32 %v230, 4294901760
    %v232 = vsub.f32 %v230, %v231
    %v233 = vand.u32 %v232, 4294901760
    %234 = vmatmul.f32.gmra.mxu0 %v233
    %v235 = vpop.f32.mrf.mxu0
    %v236 = vadd.f32 %v193, %v235
    %v237 = vand.u32 %v158, 4294901760
    %v238 = vsub.f32 %v158, %v237
    %v239 = vand.u32 %v238, 4294901760
    %v240 = vsub.f32 %v238, %v239
    %v241 = vand.u32 %v240, 4294901760
    %242 = vmatmul.f32.gmra.mxu0 %v241
    %v243 = vpop.f32.mrf.mxu0
    %v244 = vadd.f32 %v193, %v243
    %245 = vdwg.mxu0
    %v246 = vand.u32 %v189, 4294901760
    %v247 = vsub.f32 %v189, %v246
    %v248 = vand.u32 %v247, 4294901760
    %v249 = vsub.f32 %v247, %v248
    %v250 = vand.u32 %v249, 4294901760
    %251 = vmatpush.msra.mxu0 %v250
    %v252 = vand.u32 %v187, 4294901760
    %v253 = vsub.f32 %v187, %v252
    %v254 = vand.u32 %v253, 4294901760
    %v255 = vsub.f32 %v253, %v254
    %v256 = vand.u32 %v255, 4294901760
    %257 = vmatpush.msra.mxu0 %v256
    %v258 = vand.u32 %v185, 4294901760
    %v259 = vsub.f32 %v185, %v258
    %v260 = vand.u32 %v259, 4294901760
    %v261 = vsub.f32 %v259, %v260
    %v262 = vand.u32 %v261, 4294901760
    %263 = vmatpush.msra.mxu0 %v262
    %v264 = vand.u32 %v183, 4294901760
    %v265 = vsub.f32 %v183, %v264
    %v266 = vand.u32 %v265, 4294901760
    %v267 = vsub.f32 %v265, %v266
    %v268 = vand.u32 %v267, 4294901760
    %269 = vmatpush.msra.mxu0 %v268
    %v270 = vand.u32 %v181, 4294901760
    %v271 = vsub.f32 %v181, %v270
    %v272 = vand.u32 %v271, 4294901760
    %v273 = vsub.f32 %v271, %v272
    %v274 = vand.u32 %v273, 4294901760
    %275 = vmatpush.msra.mxu0 %v274
    %v276 = vand.u32 %v179, 4294901760
    %v277 = vsub.f32 %v179, %v276
    %v278 = vand.u32 %v277, 4294901760
    %v279 = vsub.f32 %v277, %v278
    %v280 = vand.u32 %v279, 4294901760
    %281 = vmatpush.msra.mxu0 %v280
    %v282 = vand.u32 %v177, 4294901760
    %v283 = vsub.f32 %v177, %v282
    %v284 = vand.u32 %v283, 4294901760
    %v285 = vsub.f32 %v283, %v284
    %v286 = vand.u32 %v285, 4294901760
    %287 = vmatpush.msra.mxu0 %v286
    %v288 = vand.u32 %v175, 4294901760
    %v289 = vsub.f32 %v175, %v288
    %v290 = vand.u32 %v289, 4294901760
    %v291 = vsub.f32 %v289, %v290
    %v292 = vand.u32 %v291, 4294901760
    %293 = vmatpush.msra.mxu0 %v292
    %v294 = vand.u32 %v173, 4294901760
    %v295 = vsub.f32 %v173, %v294
    %v296 = vand.u32 %v295, 4294901760
    %v297 = vsub.f32 %v295, %v296
    %v298 = vand.u32 %v297, 4294901760
    %299 = vmatpush.msra.mxu0 %v298
    %v300 = vand.u32 %v171, 4294901760
    %v301 = vsub.f32 %v171, %v300
    %v302 = vand.u32 %v301, 4294901760
    %v303 = vsub.f32 %v301, %v302
    %v304 = vand.u32 %v303, 4294901760
    %305 = vmatpush.msra.mxu0 %v304
    %v306 = vand.u32 %v169, 4294901760
    %v307 = vsub.f32 %v169, %v306
    %v308 = vand.u32 %v307, 4294901760
    %v309 = vsub.f32 %v307, %v308
    %v310 = vand.u32 %v309, 4294901760
    %311 = vmatpush.msra.mxu0 %v310
    %v312 = vand.u32 %v167, 4294901760
    %v313 = vsub.f32 %v167, %v312
    %v314 = vand.u32 %v313, 4294901760
    %v315 = vsub.f32 %v313, %v314
    %v316 = vand.u32 %v315, 4294901760
    %317 = vmatpush.msra.mxu0 %v316
    %v318 = vand.u32 %v165, 4294901760
    %v319 = vsub.f32 %v165, %v318
    %v320 = vand.u32 %v319, 4294901760
    %v321 = vsub.f32 %v319, %v320
    %v322 = vand.u32 %v321, 4294901760
    %323 = vmatpush.msra.mxu0 %v322
    %v324 = vand.u32 %v163, 4294901760
    %v325 = vsub.f32 %v163, %v324
    %v326 = vand.u32 %v325, 4294901760
    %v327 = vsub.f32 %v325, %v326
    %v328 = vand.u32 %v327, 4294901760
    %329 = vmatpush.msra.mxu0 %v328
    %v330 = vand.u32 %v161, 4294901760
    %v331 = vsub.f32 %v161, %v330
    %v332 = vand.u32 %v331, 4294901760
    %v333 = vsub.f32 %v331, %v332
    %v334 = vand.u32 %v333, 4294901760
    %335 = vmatpush.msra.mxu0 %v334
    %v336 = vand.u32 %v159, 4294901760
    %v337 = vsub.f32 %v159, %v336
    %v338 = vand.u32 %v337, 4294901760
    %v339 = vsub.f32 %v337, %v338
    %v340 = vand.u32 %v339, 4294901760
    %341 = vmatpush.msra.mxu0 %v340
    %v342 = vand.u32 %v157, 4294901760
    %343 = vmatmul.f32.gmra.mxu0 %v342
    %v344 = vpop.f32.mrf.mxu0
    %v345 = vadd.f32 %v236, %v344
    %v346 = vand.u32 %v158, 4294901760
    %347 = vmatmul.f32.gmra.mxu0 %v346
    %v348 = vpop.f32.mrf.mxu0
    %v349 = vadd.f32 %v244, %v348
    %350 = vdwg.mxu0
    %v351 = vand.u32 %v189, 4294901760
    %v352 = vsub.f32 %v189, %v351
    %353 = vmatpush.msra.mxu0 %v352
    %v354 = vand.u32 %v187, 4294901760
    %v355 = vsub.f32 %v187, %v354
    %356 = vmatpush.msra.mxu0 %v355
    %v357 = vand.u32 %v185, 4294901760
    %v358 = vsub.f32 %v185, %v357
    %359 = vmatpush.msra.mxu0 %v358
    %v360 = vand.u32 %v183, 4294901760
    %v361 = vsub.f32 %v183, %v360
    %362 = vmatpush.msra.mxu0 %v361
    %v363 = vand.u32 %v181, 4294901760
    %v364 = vsub.f32 %v181, %v363
    %365 = vmatpush.msra.mxu0 %v364
    %v366 = vand.u32 %v179, 4294901760
    %v367 = vsub.f32 %v179, %v366
    %368 = vmatpush.msra.mxu0 %v367
    %v369 = vand.u32 %v177, 4294901760
    %v370 = vsub.f32 %v177, %v369
    %371 = vmatpush.msra.mxu0 %v370
    %v372 = vand.u32 %v175, 4294901760
    %v373 = vsub.f32 %v175, %v372
    %374 = vmatpush.msra.mxu0 %v373
    %v375 = vand.u32 %v173, 4294901760
    %v376 = vsub.f32 %v173, %v375
    %377 = vmatpush.msra.mxu0 %v376
    %v378 = vand.u32 %v171, 4294901760
    %v379 = vsub.f32 %v171, %v378
    %380 = vmatpush.msra.mxu0 %v379
    %v381 = vand.u32 %v169, 4294901760
    %v382 = vsub.f32 %v169, %v381
    %383 = vmatpush.msra.mxu0 %v382
    %v384 = vand.u32 %v167, 4294901760
    %v385 = vsub.f32 %v167, %v384
    %386 = vmatpush.msra.mxu0 %v385
    %v387 = vand.u32 %v165, 4294901760
    %v388 = vsub.f32 %v165, %v387
    %389 = vmatpush.msra.mxu0 %v388
    %v390 = vand.u32 %v163, 4294901760
    %v391 = vsub.f32 %v163, %v390
    %392 = vmatpush.msra.mxu0 %v391
    %v393 = vand.u32 %v161, 4294901760
    %v394 = vsub.f32 %v161, %v393
    %395 = vmatpush.msra.mxu0 %v394
    %v396 = vand.u32 %v159, 4294901760
    %v397 = vsub.f32 %v159, %v396
    %398 = vmatpush.msra.mxu0 %v397
    %v399 = vand.u32 %v157, 4294901760
    %v400 = vsub.f32 %v157, %v399
    %401 = vmatmul.f32.gmra.mxu0 %v400
    %v402 = vpop.f32.mrf.mxu0
    %v403 = vadd.f32 %v345, %v402
    %v404 = vand.u32 %v158, 4294901760
    %v405 = vsub.f32 %v158, %v404
    %406 = vmatmul.f32.gmra.mxu0 %v405
    %v407 = vpop.f32.mrf.mxu0
    %v408 = vadd.f32 %v349, %v407
    %409 = vdwg.mxu0
    %v410 = vand.u32 %v189, 4294901760
    %411 = vmatpush.msra.mxu0 %v410
    %v412 = vand.u32 %v187, 4294901760
    %413 = vmatpush.msra.mxu0 %v412
    %v414 = vand.u32 %v185, 4294901760
    %415 = vmatpush.msra.mxu0 %v414
    %v416 = vand.u32 %v183, 4294901760
    %417 = vmatpush.msra.mxu0 %v416
    %v418 = vand.u32 %v181, 4294901760
    %419 = vmatpush.msra.mxu0 %v418
    %v420 = vand.u32 %v179, 4294901760
    %421 = vmatpush.msra.mxu0 %v420
    %v422 = vand.u32 %v177, 4294901760
    %423 = vmatpush.msra.mxu0 %v422
    %v424 = vand.u32 %v175, 4294901760
    %425 = vmatpush.msra.mxu0 %v424
    %v426 = vand.u32 %v173, 4294901760
    %427 = vmatpush.msra.mxu0 %v426
    %v428 = vand.u32 %v171, 4294901760
    %429 = vmatpush.msra.mxu0 %v428
    %v430 = vand.u32 %v169, 4294901760
    %431 = vmatpush.msra.mxu0 %v430
    %v432 = vand.u32 %v167, 4294901760
    %433 = vmatpush.msra.mxu0 %v432
    %v434 = vand.u32 %v165, 4294901760
    %435 = vmatpush.msra.mxu0 %v434
    %v436 = vand.u32 %v163, 4294901760
    %437 = vmatpush.msra.mxu0 %v436
    %v438 = vand.u32 %v161, 4294901760
    %439 = vmatpush.msra.mxu0 %v438
    %v440 = vand.u32 %v159, 4294901760
    %441 = vmatpush.msra.mxu0 %v440
    %v442 = vand.u32 %v157, 4294901760
    %v443 = vsub.f32 %v157, %v442
    %v444 = vand.u32 %v443, 4294901760
    %445 = vmatmul.f32.gmra.mxu0 %v444
    %v446 = vpop.f32.mrf.mxu0
    %v447 = vadd.f32 %v403, %v446
    %v448 = vand.u32 %v158, 4294901760
    %v449 = vsub.f32 %v158, %v448
    %v450 = vand.u32 %v449, 4294901760
    %451 = vmatmul.f32.gmra.mxu0 %v450
    %v452 = vpop.f32.mrf.mxu0
    %v453 = vadd.f32 %v408, %v452
    %454 = vdwg.mxu0
    %v455 = vand.u32 %v189, 4294901760
    %v456 = vsub.f32 %v189, %v455
    %v457 = vand.u32 %v456, 4294901760
    %458 = vmatpush.msra.mxu0 %v457
    %v459 = vand.u32 %v187, 4294901760
    %v460 = vsub.f32 %v187, %v459
    %v461 = vand.u32 %v460, 4294901760
    %462 = vmatpush.msra.mxu0 %v461
    %v463 = vand.u32 %v185, 4294901760
    %v464 = vsub.f32 %v185, %v463
    %v465 = vand.u32 %v464, 4294901760
    %466 = vmatpush.msra.mxu0 %v465
    %v467 = vand.u32 %v183, 4294901760
    %v468 = vsub.f32 %v183, %v467
    %v469 = vand.u32 %v468, 4294901760
    %470 = vmatpush.msra.mxu0 %v469
    %v471 = vand.u32 %v181, 4294901760
    %v472 = vsub.f32 %v181, %v471
    %v473 = vand.u32 %v472, 4294901760
    %474 = vmatpush.msra.mxu0 %v473
    %v475 = vand.u32 %v179, 4294901760
    %v476 = vsub.f32 %v179, %v475
    %v477 = vand.u32 %v476, 4294901760
    %478 = vmatpush.msra.mxu0 %v477
    %v479 = vand.u32 %v177, 4294901760
    %v480 = vsub.f32 %v177, %v479
    %v481 = vand.u32 %v480, 4294901760
    %482 = vmatpush.msra.mxu0 %v481
    %v483 = vand.u32 %v175, 4294901760
    %v484 = vsub.f32 %v175, %v483
    %v485 = vand.u32 %v484, 4294901760
    %486 = vmatpush.msra.mxu0 %v485
    %v487 = vand.u32 %v173, 4294901760
    %v488 = vsub.f32 %v173, %v487
    %v489 = vand.u32 %v488, 4294901760
    %490 = vmatpush.msra.mxu0 %v489
    %v491 = vand.u32 %v171, 4294901760
    %v492 = vsub.f32 %v171, %v491
    %v493 = vand.u32 %v492, 4294901760
    %494 = vmatpush.msra.mxu0 %v493
    %v495 = vand.u32 %v169, 4294901760
    %v496 = vsub.f32 %v169, %v495
    %v497 = vand.u32 %v496, 4294901760
    %498 = vmatpush.msra.mxu0 %v497
    %v499 = vand.u32 %v167, 4294901760
    %v500 = vsub.f32 %v167, %v499
    %v501 = vand.u32 %v500, 4294901760
    %502 = vmatpush.msra.mxu0 %v501
    %v503 = vand.u32 %v165, 4294901760
    %v504 = vsub.f32 %v165, %v503
    %v505 = vand.u32 %v504, 4294901760
    %506 = vmatpush.msra.mxu0 %v505
    %v507 = vand.u32 %v163, 4294901760
    %v508 = vsub.f32 %v163, %v507
    %v509 = vand.u32 %v508, 4294901760
    %510 = vmatpush.msra.mxu0 %v509
    %v511 = vand.u32 %v161, 4294901760
    %v512 = vsub.f32 %v161, %v511
    %v513 = vand.u32 %v512, 4294901760
    %514 = vmatpush.msra.mxu0 %v513
    %v515 = vand.u32 %v159, 4294901760
    %v516 = vsub.f32 %v159, %v515
    %v517 = vand.u32 %v516, 4294901760
    %518 = vmatpush.msra.mxu0 %v517
    %v519 = vand.u32 %v157, 4294901760
    %520 = vmatmul.f32.gmra.mxu0 %v519
    %v521 = vpop.f32.mrf.mxu0
    %v522 = vadd.f32 %v447, %v521
    %v523 = vand.u32 %v158, 4294901760
    %524 = vmatmul.f32.gmra.mxu0 %v523
    %v525 = vpop.f32.mrf.mxu0
    %v526 = vadd.f32 %v453, %v525
    %527 = vdwg.mxu0
    %v528 = vand.u32 %v189, 4294901760
    %529 = vmatpush.msra.mxu0 %v528
    %v530 = vand.u32 %v187, 4294901760
    %531 = vmatpush.msra.mxu0 %v530
    %v532 = vand.u32 %v185, 4294901760
    %533 = vmatpush.msra.mxu0 %v532
    %v534 = vand.u32 %v183, 4294901760
    %535 = vmatpush.msra.mxu0 %v534
    %v536 = vand.u32 %v181, 4294901760
    %537 = vmatpush.msra.mxu0 %v536
    %v538 = vand.u32 %v179, 4294901760
    %539 = vmatpush.msra.mxu0 %v538
    %v540 = vand.u32 %v177, 4294901760
    %541 = vmatpush.msra.mxu0 %v540
    %v542 = vand.u32 %v175, 4294901760
    %543 = vmatpush.msra.mxu0 %v542
    %v544 = vand.u32 %v173, 4294901760
    %545 = vmatpush.msra.mxu0 %v544
    %v546 = vand.u32 %v171, 4294901760
    %547 = vmatpush.msra.mxu0 %v546
    %v548 = vand.u32 %v169, 4294901760
    %549 = vmatpush.msra.mxu0 %v548
    %v550 = vand.u32 %v167, 4294901760
    %551 = vmatpush.msra.mxu0 %v550
    %v552 = vand.u32 %v165, 4294901760
    %553 = vmatpush.msra.mxu0 %v552
    %v554 = vand.u32 %v163, 4294901760
    %555 = vmatpush.msra.mxu0 %v554
    %v556 = vand.u32 %v161, 4294901760
    %557 = vmatpush.msra.mxu0 %v556
    %v558 = vand.u32 %v159, 4294901760
    %559 = vmatpush.msra.mxu0 %v558
    %v560 = vand.u32 %v157, 4294901760
    %561 = vmatmul.f32.gmra.mxu0 %v560
    %v562 = vpop.f32.mrf.mxu0
    %v563 = vadd.f32 %v522, %v562
    %v564 = vand.u32 %v158, 4294901760
    %565 = vmatmul.f32.gmra.mxu0 %v564
    %v566 = vpop.f32.mrf.mxu0
    %v567 = vadd.f32 %v526, %v566
    %568 = vdwg.mxu0
    %v569 = vand.u32 %v190, 4294901760
    %570 = vmatpush.msra.mxu0 %v569
    %v571 = vand.u32 %v188, 4294901760
    %572 = vmatpush.msra.mxu0 %v571
    %v573 = vand.u32 %v186, 4294901760
    %574 = vmatpush.msra.mxu0 %v573
    %v575 = vand.u32 %v184, 4294901760
    %576 = vmatpush.msra.mxu0 %v575
    %v577 = vand.u32 %v182, 4294901760
    %578 = vmatpush.msra.mxu0 %v577
    %v579 = vand.u32 %v180, 4294901760
    %580 = vmatpush.msra.mxu0 %v579
    %v581 = vand.u32 %v178, 4294901760
    %582 = vmatpush.msra.mxu0 %v581
    %v583 = vand.u32 %v176, 4294901760
    %584 = vmatpush.msra.mxu0 %v583
    %v585 = vand.u32 %v174, 4294901760
    %586 = vmatpush.msra.mxu0 %v585
    %v587 = vand.u32 %v172, 4294901760
    %588 = vmatpush.msra.mxu0 %v587
    %v589 = vand.u32 %v170, 4294901760
    %590 = vmatpush.msra.mxu0 %v589
    %v591 = vand.u32 %v168, 4294901760
    %592 = vmatpush.msra.mxu0 %v591
    %v593 = vand.u32 %v166, 4294901760
    %594 = vmatpush.msra.mxu0 %v593
    %v595 = vand.u32 %v164, 4294901760
    %596 = vmatpush.msra.mxu0 %v595
    %v597 = vand.u32 %v162, 4294901760
    %598 = vmatpush.msra.mxu0 %v597
    %v599 = vand.u32 %v160, 4294901760
    %600 = vmatpush.msra.mxu0 %v599
    %v601 = vand.u32 %v157, 4294901760
    %v602 = vsub.f32 %v157, %v601
    %v603 = vand.u32 %v602, 4294901760
    %v604 = vsub.f32 %v602, %v603
    %v605 = vand.u32 %v604, 4294901760
    %606 = vmatmul.f32.gmra.mxu0 %v605
    %v607 = vpop.f32.mrf.mxu0
    %v608 = vadd.f32 %v194, %v607
    %v609 = vand.u32 %v158, 4294901760
    %v610 = vsub.f32 %v158, %v609
    %v611 = vand.u32 %v610, 4294901760
    %v612 = vsub.f32 %v610, %v611
    %v613 = vand.u32 %v612, 4294901760
    %614 = vmatmul.f32.gmra.mxu0 %v613
    %v615 = vpop.f32.mrf.mxu0
    %v616 = vadd.f32 %v194, %v615
    %617 = vdwg.mxu0
    %v618 = vand.u32 %v190, 4294901760
    %v619 = vsub.f32 %v190, %v618
    %v620 = vand.u32 %v619, 4294901760
    %v621 = vsub.f32 %v619, %v620
    %v622 = vand.u32 %v621, 4294901760
    %623 = vmatpush.msra.mxu0 %v622
    %v624 = vand.u32 %v188, 4294901760
    %v625 = vsub.f32 %v188, %v624
    %v626 = vand.u32 %v625, 4294901760
    %v627 = vsub.f32 %v625, %v626
    %v628 = vand.u32 %v627, 4294901760
    %629 = vmatpush.msra.mxu0 %v628
    %v630 = vand.u32 %v186, 4294901760
    %v631 = vsub.f32 %v186, %v630
    %v632 = vand.u32 %v631, 4294901760
    %v633 = vsub.f32 %v631, %v632
    %v634 = vand.u32 %v633, 4294901760
    %635 = vmatpush.msra.mxu0 %v634
    %v636 = vand.u32 %v184, 4294901760
    %v637 = vsub.f32 %v184, %v636
    %v638 = vand.u32 %v637, 4294901760
    %v639 = vsub.f32 %v637, %v638
    %v640 = vand.u32 %v639, 4294901760
    %641 = vmatpush.msra.mxu0 %v640
    %v642 = vand.u32 %v182, 4294901760
    %v643 = vsub.f32 %v182, %v642
    %v644 = vand.u32 %v643, 4294901760
    %v645 = vsub.f32 %v643, %v644
    %v646 = vand.u32 %v645, 4294901760
    %647 = vmatpush.msra.mxu0 %v646
    %v648 = vand.u32 %v180, 4294901760
    %v649 = vsub.f32 %v180, %v648
    %v650 = vand.u32 %v649, 4294901760
    %v651 = vsub.f32 %v649, %v650
    %v652 = vand.u32 %v651, 4294901760
    %653 = vmatpush.msra.mxu0 %v652
    %v654 = vand.u32 %v178, 4294901760
    %v655 = vsub.f32 %v178, %v654
    %v656 = vand.u32 %v655, 4294901760
    %v657 = vsub.f32 %v655, %v656
    %v658 = vand.u32 %v657, 4294901760
    %659 = vmatpush.msra.mxu0 %v658
    %v660 = vand.u32 %v176, 4294901760
    %v661 = vsub.f32 %v176, %v660
    %v662 = vand.u32 %v661, 4294901760
    %v663 = vsub.f32 %v661, %v662
    %v664 = vand.u32 %v663, 4294901760
    %665 = vmatpush.msra.mxu0 %v664
    %v666 = vand.u32 %v174, 4294901760
    %v667 = vsub.f32 %v174, %v666
    %v668 = vand.u32 %v667, 4294901760
    %v669 = vsub.f32 %v667, %v668
    %v670 = vand.u32 %v669, 4294901760
    %671 = vmatpush.msra.mxu0 %v670
    %v672 = vand.u32 %v172, 4294901760
    %v673 = vsub.f32 %v172, %v672
    %v674 = vand.u32 %v673, 4294901760
    %v675 = vsub.f32 %v673, %v674
    %v676 = vand.u32 %v675, 4294901760
    %677 = vmatpush.msra.mxu0 %v676
    %v678 = vand.u32 %v170, 4294901760
    %v679 = vsub.f32 %v170, %v678
    %v680 = vand.u32 %v679, 4294901760
    %v681 = vsub.f32 %v679, %v680
    %v682 = vand.u32 %v681, 4294901760
    %683 = vmatpush.msra.mxu0 %v682
    %v684 = vand.u32 %v168, 4294901760
    %v685 = vsub.f32 %v168, %v684
    %v686 = vand.u32 %v685, 4294901760
    %v687 = vsub.f32 %v685, %v686
    %v688 = vand.u32 %v687, 4294901760
    %689 = vmatpush.msra.mxu0 %v688
    %v690 = vand.u32 %v166, 4294901760
    %v691 = vsub.f32 %v166, %v690
    %v692 = vand.u32 %v691, 4294901760
    %v693 = vsub.f32 %v691, %v692
    %v694 = vand.u32 %v693, 4294901760
    %695 = vmatpush.msra.mxu0 %v694
    %v696 = vand.u32 %v164, 4294901760
    %v697 = vsub.f32 %v164, %v696
    %v698 = vand.u32 %v697, 4294901760
    %v699 = vsub.f32 %v697, %v698
    %v700 = vand.u32 %v699, 4294901760
    %701 = vmatpush.msra.mxu0 %v700
    %v702 = vand.u32 %v162, 4294901760
    %v703 = vsub.f32 %v162, %v702
    %v704 = vand.u32 %v703, 4294901760
    %v705 = vsub.f32 %v703, %v704
    %v706 = vand.u32 %v705, 4294901760
    %707 = vmatpush.msra.mxu0 %v706
    %v708 = vand.u32 %v160, 4294901760
    %v709 = vsub.f32 %v160, %v708
    %v710 = vand.u32 %v709, 4294901760
    %v711 = vsub.f32 %v709, %v710
    %v712 = vand.u32 %v711, 4294901760
    %713 = vmatpush.msra.mxu0 %v712
    %v714 = vand.u32 %v157, 4294901760
    %715 = vmatmul.f32.gmra.mxu0 %v714
    %v716 = vpop.f32.mrf.mxu0
    %v717 = vadd.f32 %v608, %v716
    %v718 = vand.u32 %v158, 4294901760
    %719 = vmatmul.f32.gmra.mxu0 %v718
    %v720 = vpop.f32.mrf.mxu0
    %v721 = vadd.f32 %v616, %v720
    %722 = vdwg.mxu0
    %v723 = vand.u32 %v190, 4294901760
    %v724 = vsub.f32 %v190, %v723
    %725 = vmatpush.msra.mxu0 %v724
    %v726 = vand.u32 %v188, 4294901760
    %v727 = vsub.f32 %v188, %v726
    %728 = vmatpush.msra.mxu0 %v727
    %v729 = vand.u32 %v186, 4294901760
    %v730 = vsub.f32 %v186, %v729
    %731 = vmatpush.msra.mxu0 %v730
    %v732 = vand.u32 %v184, 4294901760
    %v733 = vsub.f32 %v184, %v732
    %734 = vmatpush.msra.mxu0 %v733
    %v735 = vand.u32 %v182, 4294901760
    %v736 = vsub.f32 %v182, %v735
    %737 = vmatpush.msra.mxu0 %v736
    %v738 = vand.u32 %v180, 4294901760
    %v739 = vsub.f32 %v180, %v738
    %740 = vmatpush.msra.mxu0 %v739
    %v741 = vand.u32 %v178, 4294901760
    %v742 = vsub.f32 %v178, %v741
    %743 = vmatpush.msra.mxu0 %v742
    %v744 = vand.u32 %v176, 4294901760
    %v745 = vsub.f32 %v176, %v744
    %746 = vmatpush.msra.mxu0 %v745
    %v747 = vand.u32 %v174, 4294901760
    %v748 = vsub.f32 %v174, %v747
    %749 = vmatpush.msra.mxu0 %v748
    %v750 = vand.u32 %v172, 4294901760
    %v751 = vsub.f32 %v172, %v750
    %752 = vmatpush.msra.mxu0 %v751
    %v753 = vand.u32 %v170, 4294901760
    %v754 = vsub.f32 %v170, %v753
    %755 = vmatpush.msra.mxu0 %v754
    %v756 = vand.u32 %v168, 4294901760
    %v757 = vsub.f32 %v168, %v756
    %758 = vmatpush.msra.mxu0 %v757
    %v759 = vand.u32 %v166, 4294901760
    %v760 = vsub.f32 %v166, %v759
    %761 = vmatpush.msra.mxu0 %v760
    %v762 = vand.u32 %v164, 4294901760
    %v763 = vsub.f32 %v164, %v762
    %764 = vmatpush.msra.mxu0 %v763
    %v765 = vand.u32 %v162, 4294901760
    %v766 = vsub.f32 %v162, %v765
    %767 = vmatpush.msra.mxu0 %v766
    %v768 = vand.u32 %v160, 4294901760
    %v769 = vsub.f32 %v160, %v768
    %770 = vmatpush.msra.mxu0 %v769
    %v771 = vand.u32 %v157, 4294901760
    %v772 = vsub.f32 %v157, %v771
    %773 = vmatmul.f32.gmra.mxu0 %v772
    %v774 = vpop.f32.mrf.mxu0
    %v775 = vadd.f32 %v717, %v774
    %v776 = vand.u32 %v158, 4294901760
    %v777 = vsub.f32 %v158, %v776
    %778 = vmatmul.f32.gmra.mxu0 %v777
    %v779 = vpop.f32.mrf.mxu0
    %v780 = vadd.f32 %v721, %v779
    %781 = vdwg.mxu0
    %v782 = vand.u32 %v190, 4294901760
    %783 = vmatpush.msra.mxu0 %v782
    %v784 = vand.u32 %v188, 4294901760
    %785 = vmatpush.msra.mxu0 %v784
    %v786 = vand.u32 %v186, 4294901760
    %787 = vmatpush.msra.mxu0 %v786
    %v788 = vand.u32 %v184, 4294901760
    %789 = vmatpush.msra.mxu0 %v788
    %v790 = vand.u32 %v182, 4294901760
    %791 = vmatpush.msra.mxu0 %v790
    %v792 = vand.u32 %v180, 4294901760
    %793 = vmatpush.msra.mxu0 %v792
    %v794 = vand.u32 %v178, 4294901760
    %795 = vmatpush.msra.mxu0 %v794
    %v796 = vand.u32 %v176, 4294901760
    %797 = vmatpush.msra.mxu0 %v796
    %v798 = vand.u32 %v174, 4294901760
    %799 = vmatpush.msra.mxu0 %v798
    %v800 = vand.u32 %v172, 4294901760
    %801 = vmatpush.msra.mxu0 %v800
    %v802 = vand.u32 %v170, 4294901760
    %803 = vmatpush.msra.mxu0 %v802
    %v804 = vand.u32 %v168, 4294901760
    %805 = vmatpush.msra.mxu0 %v804
    %v806 = vand.u32 %v166, 4294901760
    %807 = vmatpush.msra.mxu0 %v806
    %v808 = vand.u32 %v164, 4294901760
    %809 = vmatpush.msra.mxu0 %v808
    %v810 = vand.u32 %v162, 4294901760
    %811 = vmatpush.msra.mxu0 %v810
    %v812 = vand.u32 %v160, 4294901760
    %813 = vmatpush.msra.mxu0 %v812
    %v814 = vand.u32 %v157, 4294901760
    %v815 = vsub.f32 %v157, %v814
    %v816 = vand.u32 %v815, 4294901760
    %817 = vmatmul.f32.gmra.mxu0 %v816
    %v818 = vpop.f32.mrf.mxu0
    %v819 = vadd.f32 %v775, %v818
    %v820 = vand.u32 %v158, 4294901760
    %v821 = vsub.f32 %v158, %v820
    %v822 = vand.u32 %v821, 4294901760
    %823 = vmatmul.f32.gmra.mxu0 %v822
    %v824 = vpop.f32.mrf.mxu0
    %v825 = vadd.f32 %v780, %v824
    %826 = vdwg.mxu0
    %v827 = vand.u32 %v190, 4294901760
    %v828 = vsub.f32 %v190, %v827
    %v829 = vand.u32 %v828, 4294901760
    %830 = vmatpush.msra.mxu0 %v829
    %v831 = vand.u32 %v188, 4294901760
    %v832 = vsub.f32 %v188, %v831
    %v833 = vand.u32 %v832, 4294901760
    %834 = vmatpush.msra.mxu0 %v833
    %v835 = vand.u32 %v186, 4294901760
    %v836 = vsub.f32 %v186, %v835
    %v837 = vand.u32 %v836, 4294901760
    %838 = vmatpush.msra.mxu0 %v837
    %v839 = vand.u32 %v184, 4294901760
    %v840 = vsub.f32 %v184, %v839
    %v841 = vand.u32 %v840, 4294901760
    %842 = vmatpush.msra.mxu0 %v841
    %v843 = vand.u32 %v182, 4294901760
    %v844 = vsub.f32 %v182, %v843
    %v845 = vand.u32 %v844, 4294901760
    %846 = vmatpush.msra.mxu0 %v845
    %v847 = vand.u32 %v180, 4294901760
    %v848 = vsub.f32 %v180, %v847
    %v849 = vand.u32 %v848, 4294901760
    %850 = vmatpush.msra.mxu0 %v849
    %v851 = vand.u32 %v178, 4294901760
    %v852 = vsub.f32 %v178, %v851
    %v853 = vand.u32 %v852, 4294901760
    %854 = vmatpush.msra.mxu0 %v853
    %v855 = vand.u32 %v176, 4294901760
    %v856 = vsub.f32 %v176, %v855
    %v857 = vand.u32 %v856, 4294901760
    %858 = vmatpush.msra.mxu0 %v857
    %v859 = vand.u32 %v174, 4294901760
    %v860 = vsub.f32 %v174, %v859
    %v861 = vand.u32 %v860, 4294901760
    %862 = vmatpush.msra.mxu0 %v861
    %v863 = vand.u32 %v172, 4294901760
    %v864 = vsub.f32 %v172, %v863
    %v865 = vand.u32 %v864, 4294901760
    %866 = vmatpush.msra.mxu0 %v865
    %v867 = vand.u32 %v170, 4294901760
    %v868 = vsub.f32 %v170, %v867
    %v869 = vand.u32 %v868, 4294901760
    %870 = vmatpush.msra.mxu0 %v869
    %v871 = vand.u32 %v168, 4294901760
    %v872 = vsub.f32 %v168, %v871
    %v873 = vand.u32 %v872, 4294901760
    %874 = vmatpush.msra.mxu0 %v873
    %v875 = vand.u32 %v166, 4294901760
    %v876 = vsub.f32 %v166, %v875
    %v877 = vand.u32 %v876, 4294901760
    %878 = vmatpush.msra.mxu0 %v877
    %v879 = vand.u32 %v164, 4294901760
    %v880 = vsub.f32 %v164, %v879
    %v881 = vand.u32 %v880, 4294901760
    %882 = vmatpush.msra.mxu0 %v881
    %v883 = vand.u32 %v162, 4294901760
    %v884 = vsub.f32 %v162, %v883
    %v885 = vand.u32 %v884, 4294901760
    %886 = vmatpush.msra.mxu0 %v885
    %v887 = vand.u32 %v160, 4294901760
    %v888 = vsub.f32 %v160, %v887
    %v889 = vand.u32 %v888, 4294901760
    %890 = vmatpush.msra.mxu0 %v889
    %v891 = vand.u32 %v157, 4294901760
    %892 = vmatmul.f32.gmra.mxu0 %v891
    %v893 = vpop.f32.mrf.mxu0
    %v894 = vadd.f32 %v819, %v893
    %v895 = vand.u32 %v158, 4294901760
    %896 = vmatmul.f32.gmra.mxu0 %v895
    %v897 = vpop.f32.mrf.mxu0
    %v898 = vadd.f32 %v825, %v897
    %899 = vdwg.mxu0
    %v900 = vand.u32 %v190, 4294901760
    %901 = vmatpush.msra.mxu0 %v900
    %v902 = vand.u32 %v188, 4294901760
    %903 = vmatpush.msra.mxu0 %v902
    %v904 = vand.u32 %v186, 4294901760
    %905 = vmatpush.msra.mxu0 %v904
    %v906 = vand.u32 %v184, 4294901760
    %907 = vmatpush.msra.mxu0 %v906
    %v908 = vand.u32 %v182, 4294901760
    %909 = vmatpush.msra.mxu0 %v908
    %v910 = vand.u32 %v180, 4294901760
    %911 = vmatpush.msra.mxu0 %v910
    %v912 = vand.u32 %v178, 4294901760
    %913 = vmatpush.msra.mxu0 %v912
    %v914 = vand.u32 %v176, 4294901760
    %915 = vmatpush.msra.mxu0 %v914
    %v916 = vand.u32 %v174, 4294901760
    %917 = vmatpush.msra.mxu0 %v916
    %v918 = vand.u32 %v172, 4294901760
    %919 = vmatpush.msra.mxu0 %v918
    %v920 = vand.u32 %v170, 4294901760
    %921 = vmatpush.msra.mxu0 %v920
    %v922 = vand.u32 %v168, 4294901760
    %923 = vmatpush.msra.mxu0 %v922
    %v924 = vand.u32 %v166, 4294901760
    %925 = vmatpush.msra.mxu0 %v924
    %v926 = vand.u32 %v164, 4294901760
    %927 = vmatpush.msra.mxu0 %v926
    %v928 = vand.u32 %v162, 4294901760
    %929 = vmatpush.msra.mxu0 %v928
    %v930 = vand.u32 %v160, 4294901760
    %931 = vmatpush.msra.mxu0 %v930
    %v932 = vand.u32 %v157, 4294901760
    %933 = vmatmul.f32.gmra.mxu0 %v932
    %v934 = vpop.f32.mrf.mxu0
    %v935 = vadd.f32 %v894, %v934
    %v936 = vand.u32 %v158, 4294901760
    %937 = vmatmul.f32.gmra.mxu0 %v936
    %v938 = vpop.f32.mrf.mxu0
    %v939 = vadd.f32 %v898, %v938
    %940 = vdwg.mxu0
    %941 = vst [vmem:[#allocation8] sm:$0xff] %v563
    %942 = vst [vmem:[#allocation8 + $0x8] sm:$0xff] %v935
    %943 = vst [vmem:[#allocation8 + $0x10] sm:$0xff] %v567
    %944 = vst [vmem:[#allocation8 + $0x18] sm:$0xff] %v939
    // Predicated region
    $region34: #{tpu_custom_call.1} parent=1 // pred_check
      _
    $region35: #{tpu_custom_call.1} parent=1 // pred_check_branch
      %946 = sbr.rel (0) target = $region37
    $region36: #{tpu_custom_call.1} parent=1 // pred_region
      %948 = vsyncadd [#allocation4], 0
      %s949 = sshll.u32 [#allocation8], 4
      %s950 = int_to_ptr.vmem [resolvable:$true] %s949
      %s951 = sshll.u32 %s5, 4
      %s952 = int_to_ptr.hbm [resolvable:$true] %s951
      %957 = dma.vmem_to_hbm [thread:$0]  %s950, 512, %s952, [#allocation4], 256, 256, 16
    $region37: #{tpu_custom_call.1} parent=1 // pred_fallthru
      _
    // Predicated region
    $region38: #{tpu_custom_call.1} parent=1 // pred_check
      _
    $region39: #{tpu_custom_call.1} parent=1 // pred_check_branch
      %959 = sbr.rel (0) target = $region41
    $region40: #{tpu_custom_call.1} parent=1 // pred_region
      %961 = dma.done [#allocation4], 512
    $region41: #{tpu_custom_call.1} parent=1 // pred_fallthru
      _
    %962 = vsyncpa [#allocation3], 1
    %963 = vsyncpa [#allocation6], 1
    %964 = vsyncpa [#allocation4], 1

</llo_original>
